<compile_context>
chip_gen: v7x
topology: tpu7x:2x2x1
jax: 0.10.0
libtpu: 0.0.40
codegen_flags: <defaults>
</compile_context>

<pallas_src>
import jax
import jax.numpy as jnp
from jax.experimental import pallas as pl
from jax.experimental.pallas import tpu as pltpu

_LANE = 128            # lanes per vreg (last dim)
_SUBLANE = 8           # f32 sublanes per vreg (second-to-last dim)
_MAX_TILE_ROWS = 4096  # 4096 rows x 128 lanes x 4 B = 2 MiB per output block


def _mean_fill_kernel(mean_ref, out_ref):
    # mean_ref: (1, 1) scalar parameter in SMEM
    # out_ref:  (tile_rows, 128) sublane+lane dense output tile in VMEM
    out_ref[...] = jnp.full(out_ref.shape, mean_ref[0, 0], out_ref.dtype)


def mean_predictor_forward(x, mean_param):
    """Pallas equivalent of MeanPredictor.forward.

    x:          any array whose leading dim is the batch (NCHW here).
    mean_param: scalar float32 parameter (the frozen nn.Parameter).
    Returns (pred, None) where pred has shape (batch, 1) float32.
    """
    batch = x.shape[0]
    mean_smem = jnp.asarray(mean_param, dtype=jnp.float32).reshape(1, 1)

    # Sublane-and-lane-dense slab: (rows, 128) with rows a multiple of 8.
    rows = -(-batch // _LANE)                                # ceil(batch / 128)
    rows = max(_SUBLANE, -(-rows // _SUBLANE) * _SUBLANE)    # multiple of 8
    tile_rows = min(rows, _MAX_TILE_ROWS)
    rows = -(-rows // tile_rows) * tile_rows                 # divisible by tile
    grid = (rows // tile_rows,)

    out_slab = pl.pallas_call(
        _mean_fill_kernel,
        out_shape=jax.ShapeDtypeStruct((rows, _LANE), jnp.float32),
        grid=grid,
        in_specs=[
            pl.BlockSpec((1, 1), lambda i: (0, 0), memory_space=pltpu.SMEM),
        ],
        out_specs=pl.BlockSpec((tile_rows, _LANE), lambda i: (i, 0)),
        compiler_params=pltpu.CompilerParams(
            dimension_semantics=("parallel",),
        ),
        cost_estimate=pl.CostEstimate(
            flops=0,
            transcendentals=0,
            bytes_accessed=rows * _LANE * 4 + 4,
        ),
    )(mean_smem)

    # Free layout plumbing outside the kernel: every element equals `mean`,
    # so any `batch` elements of the slab give the correct (batch, 1) output.
    pred = out_slab.reshape(-1)[:batch].reshape(batch, 1)

    # TODO(synk): the PyTorch forward returns (pred, None); None has no Pallas
    # representation, so it is returned from the Python wrapper.
    return pred, None


if __name__ == "__main__":
    key = jax.random.PRNGKey(0)
    # Small NCHW input consistent with the module (forward only uses x.size(0)).
    x = jax.random.normal(key, (2, 4, 16, 16), dtype=jnp.float32)

    # Deterministic parameter, mirroring nn.Parameter(torch.tensor(target_mean)).
    target_mean = 3.25
    mean_param = jnp.float32(target_mean)

    pred, aux = mean_predictor_forward(x, mean_param)
    pred = jax.block_until_ready(pred)

    expected = jnp.full((x.shape[0], 1), target_mean, dtype=jnp.float32)
    assert pred.shape == (2, 1)
    assert pred.dtype == jnp.float32
    assert aux is None
    assert bool(jnp.allclose(pred, expected))

    print("KERNEL_OK")
</pallas_src>

<mosaic_0001>
module attributes {stable_mosaic.version = 11 : i64} {
  func.func @_mean_fill_kernel(%arg0: i32, %arg1: memref<1x1xf32, #tpu.memory_space<smem>>, %arg2: memref<8x128xf32, #tpu.memory_space<vmem>>) attributes {dimension_semantics = [#tpu.dimension_semantics<parallel>], iteration_bounds = array<i64: 1>, scalar_prefetch = 0 : i64, scratch_operands = 0 : i64, tpu.core_type = #tpu.core_type<tc>, window_params = [{transform_indices = @transform_0, window_bounds = array<i64: 1, 1>}, {transform_indices = @transform_1, window_bounds = array<i64: 8, 128>}]} {
    %c0 = arith.constant 0 : index
    %c0_0 = arith.constant 0 : index
    %0 = memref.load %arg1[%c0, %c0_0] : memref<1x1xf32, #tpu.memory_space<smem>>
    %1 = vector.broadcast %0 : f32 to vector<8x128xf32>
    %c0_1 = arith.constant 0 : index
    %c0_2 = arith.constant 0 : index
    %2 = vector.load %arg2[%c0_1, %c0_2] : memref<8x128xf32, #tpu.memory_space<vmem>>, vector<8x128xf32>
    tpu.vector_store %arg2[%c0_1, %c0_2], %1 {strides = array<i32>} : memref<8x128xf32, #tpu.memory_space<vmem>>, vector<8x128xf32>,
    return
  }
  func.func @transform_0(%arg0: i32) -> (i32, i32) {
    %c0_i32 = arith.constant 0 : i32
    %c0_i32_0 = arith.constant 0 : i32
    %c0_i32_1 = arith.constant 0 : i32
    return %c0_i32, %c0_i32_0 : i32, i32
  }
  func.func @transform_1(%arg0: i32) -> (i32, i32) {
    %c0_i32 = arith.constant 0 : i32
    %c0_i32_0 = arith.constant 0 : i32
    return %arg0, %c0_i32 : i32, i32
  }
}

</mosaic_0001>

<llo_original>
// kernel: tpu_custom_call.1
$region0: #{tpu_custom_call.1}
  #allocation0 [shape = 'u32[]', space=smem, size = 0x4, offset = 0x4, fixed_abs, tag = 'smem constant byte address 0x4 - core index']
  #allocation1 [shape = 'u32[144,128]{1,0:T(1,128)}', space=vmem, size = 0x12000, scoped, tag = 'internal scratch']
  #allocation2 [shape = 'f32[1,1]{1,0:T(1,128)S(6)}', space=smem, size = 0x200, scoped, tag = 'scoped memory for tpu_custom_call.1']
  %s0 = inlined_call_operand.<no memory space> [shape: f32[1,1], index: 0, kind: input, shape index: {}]
  %s1 = inlined_call_operand.hbm [shape: f32[8,128], index: 1, kind: output, shape index: {}]
  %s2 = sld [smem:[#allocation0]]
  $region14: #{tpu_custom_call.1} parent=0
    _
  %s4 = ssub.s32 1, %s2
  %s5 = scalar_select 0, %s4, %s2
  %6 = sst [smem:[#allocation2]] %s0
  $region1: #{tpu_custom_call.1} parent=0
    #allocation3 [shape = 'u8[4096]{0}', space=vmem, size = 0x1000, scoped, tag = 'output window, operand 0, single buffered']
    #allocation4 [shape = 's32[1]{0}', space=sflag, size = 0x4, scoped, tag = 'scoped memory for tpu_custom_call.1']
    %7 = vsyncpa [#allocation4], 0
    // Predicated region
    $region2: #{tpu_custom_call.1} parent=1 // pred_check
      _
    $region3: #{tpu_custom_call.1} parent=1 // pred_check_branch
      %9 = sbr.rel (0) target = $region5
    $region4: #{tpu_custom_call.1} parent=1 // pred_region
      _
    $region5: #{tpu_custom_call.1} parent=1 // pred_fallthru
      _
    %s10 = sld [smem:[#allocation2]]
    %v11 = vstv %s10
    %12 = vst [vmem:[#allocation3] sm:$0xff] %v11
    // Predicated region
    $region6: #{tpu_custom_call.1} parent=1 // pred_check
      _
    $region7: #{tpu_custom_call.1} parent=1 // pred_check_branch
      %14 = sbr.rel (0) target = $region9
    $region8: #{tpu_custom_call.1} parent=1 // pred_region
      %s16 = ssub.s32 128, 128
      %17 = vsyncadd [#allocation4], %s16
      %s19 = sshll.u32 [#allocation3], 4
      %s20 = int_to_ptr.vmem [resolvable:$true] %s19
      %22 = dma.vmem_to_hbm [thread:$0]  %s20, 128, %s1, [#allocation4]
    $region9: #{tpu_custom_call.1} parent=1 // pred_fallthru
      _
    // Predicated region
    $region10: #{tpu_custom_call.1} parent=1 // pred_check
      _
    $region11: #{tpu_custom_call.1} parent=1 // pred_check_branch
      %24 = sbr.rel (0) target = $region13
    $region12: #{tpu_custom_call.1} parent=1 // pred_region
      %25 = dma.done [#allocation4], 128
    $region13: #{tpu_custom_call.1} parent=1 // pred_fallthru
      _
    %26 = vsyncpa [#allocation4], 1

</llo_original>
